<compile_context>
chip_gen: v5e
topology: v5e:2x2
jax: 0.10.0
libtpu: 0.0.40
codegen_flags: <defaults>
</compile_context>

<pallas_src>
import jax
import jax.numpy as jnp
from jax.experimental import pallas as pl
from jax.experimental.pallas import tpu as pltpu


def _round_up(n, m):
    return ((n + m - 1) // m) * m


def mlp_kernel(xT_ref, w1T_ref, b1_ref, w2T_ref, b2_ref, o_ref):
    # hT = sigmoid(W1^T @ xT + b1): MXU matmul (f32 acc) + lane-broadcast bias + EUP exp.
    hT = jnp.dot(w1T_ref[...], xT_ref[...], preferred_element_type=jnp.float32)  # (32, tn)
    hT = jax.nn.sigmoid(hT + b1_ref[...])                                        # b1 is (32,1)
    # outT = W2^T @ hT + b2: N=... M=1 matmul rides the otherwise-idle MXU slot;
    # result is a lane-dense (1, tn) row -> full-width store.
    outT = jnp.dot(w2T_ref[...], hT, preferred_element_type=jnp.float32) + b2_ref[0, 0]
    o_ref[...] = outT.astype(o_ref.dtype)


def my_model_forward(x, w1, b1, w2, b2, *, tn=32768, min_pallas_batch=1024):
    """x: (B, 10) f32.  Returns (B, 1), identical to the PyTorch MLP.

    w1: (10, 32), b1: (32,), w2: (32, 1), b2: (1,).
    """
    B, D_in = x.shape
    D_hid = w1.shape[1]

    # Tiny batches: pure XLA is strictly faster than any kernel launch here.
    if B < min_pallas_batch:
        return jnp.dot(jax.nn.sigmoid(jnp.dot(x, w1) + b1.reshape(1, D_hid)), w2) \
            + b2.reshape(1, 1)

    # Lane tile: multiple of 128, capped so the grid keeps >= ~8 steps when B allows
    # (megacore split on v7x + pipelining), and capped at `tn` (VMEM ~192*tn bytes).
    tn = max(128, min(tn, _round_up(pl.cdiv(B, 8), 128)))
    Bp = _round_up(B, tn)

    # Batch-on-lanes layout: one wrapper transpose + zero-pad of the lane axis.
    xT = x.T                                   # (10, B)
    if Bp != B:
        xT = jnp.pad(xT, ((0, 0), (0, Bp - B)))

    w1T = w1.T                                 # (32, 10) -- resident in VMEM
    b1_col = b1.reshape(D_hid, 1)              # (32, 1)  -- broadcasts over lanes
    w2T = w2.reshape(D_hid, 1).T               # (1, 32)
    b2_2d = b2.reshape(1, 1)                   # scalar, lives in SMEM

    out_t = pl.pallas_call(
        mlp_kernel,
        out_shape=jax.ShapeDtypeStruct((1, Bp), x.dtype),
        grid=(Bp // tn,),
        in_specs=[
            pl.BlockSpec((D_in, tn), lambda i: (0, i)),        # xT: tiled over lanes (batch)
            pl.BlockSpec((D_hid, D_in), lambda i: (0, 0)),     # W1^T: resident
            pl.BlockSpec((D_hid, 1), lambda i: (0, 0)),        # b1 column: resident
            pl.BlockSpec((1, D_hid), lambda i: (0, 0)),        # W2^T row: resident
            pl.BlockSpec(memory_space=pltpu.MemorySpace.SMEM), # b2 scalar in SMEM
        ],
        out_specs=pl.BlockSpec((1, tn), lambda i: (0, i)),     # lane-dense output row
        compiler_params=pltpu.CompilerParams(
            dimension_semantics=("parallel",)),                # megacore split on v7x
    )(xT, w1T, b1_col, w2T, b2_2d)

    return out_t[0, :B].reshape(B, 1)


def init_params(key):
    # Deterministic init mimicking nn.Linear's default U(-1/sqrt(fan_in), 1/sqrt(fan_in)).
    k1, k2, k3, k4 = jax.random.split(key, 4)
    bound1 = 1.0 / jnp.sqrt(10.0)
    bound2 = 1.0 / jnp.sqrt(32.0)
    w1 = jax.random.uniform(k1, (10, 32), jnp.float32, -bound1, bound1)
    b1 = jax.random.uniform(k2, (32,), jnp.float32, -bound1, bound1)
    w2 = jax.random.uniform(k3, (32, 1), jnp.float32, -bound2, bound2)
    b2 = jax.random.uniform(k4, (1,), jnp.float32, -bound2, bound2)
    return w1, b1, w2, b2


if __name__ == "__main__":
    key = jax.random.PRNGKey(0)
    kx, kp = jax.random.split(key)
    w1, b1, w2, b2 = init_params(kp)

    def ref_fn(x):
        # Pure-JAX reference of the same MLP.
        return jnp.dot(jax.nn.sigmoid(jnp.dot(x, w1) + b1), w2) + b2

    # 1) Tiny batch (the original PyTorch usage size): takes the XLA fallback path.
    x_small = jax.random.normal(kx, (8, 10), jnp.float32)
    out_small = jax.block_until_ready(my_model_forward(x_small, w1, b1, w2, b2))
    assert out_small.shape == (8, 1)
    assert jnp.allclose(out_small, ref_fn(x_small), atol=1e-5, rtol=1e-4)

    # 2) Force the Pallas kernel at a small multi-tile size: tn=128 -> 3 grid steps + lane padding.
    x_med = jax.random.normal(kx, (300, 10), jnp.float32)
    out_med = jax.block_until_ready(
        my_model_forward(x_med, w1, b1, w2, b2, tn=128, min_pallas_batch=0))
    assert out_med.shape == (300, 1)
    assert jnp.allclose(out_med, ref_fn(x_med), atol=1e-5, rtol=1e-4)

    # 3) Default Pallas path: B=4096 -> tn=512, grid of 8 steps (megacore/pipeline friendly).
    x_big = jax.random.normal(kx, (4096, 10), jnp.float32)
    out_big = jax.block_until_ready(my_model_forward(x_big, w1, b1, w2, b2))
    assert out_big.shape == (4096, 1)
    assert jnp.allclose(out_big, ref_fn(x_big), atol=1e-5, rtol=1e-4)

    print("KERNEL_OK")
</pallas_src>

<mosaic_0001>
module attributes {stable_mosaic.version = 11 : i64} {
  func.func @mlp_kernel(%arg0: i32, %arg1: memref<10x128xf32, #tpu.memory_space<vmem>>, %arg2: memref<32x10xf32, #tpu.memory_space<vmem>>, %arg3: memref<32x1xf32, #tpu.memory_space<vmem>>, %arg4: memref<1x32xf32, #tpu.memory_space<vmem>>, %arg5: memref<1x1xf32, #tpu.memory_space<smem>>, %arg6: memref<1x128xf32, #tpu.memory_space<vmem>>) attributes {dimension_semantics = [#tpu.dimension_semantics<parallel>], iteration_bounds = array<i64: 3>, scalar_prefetch = 0 : i64, scratch_operands = 0 : i64, tpu.core_type = #tpu.core_type<tc>, window_params = [{transform_indices = @transform_0, window_bounds = array<i64: 10, 128>}, {pipeline_mode = #tpu.pipeline_mode<synchronous>, transform_indices = @transform_1, window_bounds = array<i64: 32, 10>}, {pipeline_mode = #tpu.pipeline_mode<synchronous>, transform_indices = @transform_2, window_bounds = array<i64: 32, 1>}, {pipeline_mode = #tpu.pipeline_mode<synchronous>, transform_indices = @transform_3, window_bounds = array<i64: 1, 32>}, {transform_indices = @transform_4, window_bounds = array<i64: 1, 1>}, {transform_indices = @transform_5, window_bounds = array<i64: 1, 128>}]} {
    %c0 = arith.constant 0 : index
    %c0_0 = arith.constant 0 : index
    %0 = vector.load %arg2[%c0, %c0_0] : memref<32x10xf32, #tpu.memory_space<vmem>>, vector<32x10xf32>
    %c0_1 = arith.constant 0 : index
    %c0_2 = arith.constant 0 : index
    %1 = vector.load %arg1[%c0_1, %c0_2] : memref<10x128xf32, #tpu.memory_space<vmem>>, vector<10x128xf32>
    %cst = arith.constant dense<0.000000e+00> : vector<32x128xf32>
    %2 = tpu.matmul %0, %1, %cst {dimension_numbers = #tpu.dot_dimension_numbers<[1], [0], [0], [1], [0, 0, 1, 1], [], []>} : vector<32x10xf32>, vector<10x128xf32>, vector<32x128xf32> -> vector<32x128xf32>
    %c0_3 = arith.constant 0 : index
    %c0_4 = arith.constant 0 : index
    %3 = vector.load %arg3[%c0_3, %c0_4] : memref<32x1xf32, #tpu.memory_space<vmem>>, vector<32x1xf32>
    %4 = vector.broadcast %3 : vector<32x1xf32> to vector<32x128xf32>
    %5 = arith.addf %2, %4 : vector<32x128xf32>
    %6 = arith.negf %5 : vector<32x128xf32>
    %7 = math.exp %6 : vector<32x128xf32>
    %cst_5 = arith.constant 1.000000e+00 : f32
    %8 = vector.broadcast %cst_5 : f32 to vector<32x128xf32>
    %9 = arith.addf %8, %7 : vector<32x128xf32>
    %10 = arith.divf %8, %9 : vector<32x128xf32>
    %c0_6 = arith.constant 0 : index
    %c0_7 = arith.constant 0 : index
    %11 = vector.load %arg4[%c0_6, %c0_7] : memref<1x32xf32, #tpu.memory_space<vmem>>, vector<1x32xf32>
    %cst_8 = arith.constant dense<0.000000e+00> : vector<1x128xf32>
    %12 = tpu.matmul %11, %10, %cst_8 {dimension_numbers = #tpu.dot_dimension_numbers<[1], [0], [0], [1], [0, 0, 1, 1], [], []>} : vector<1x32xf32>, vector<32x128xf32>, vector<1x128xf32> -> vector<1x128xf32>
    %c0_9 = arith.constant 0 : index
    %c0_10 = arith.constant 0 : index
    %13 = memref.load %arg5[%c0_9, %c0_10] : memref<1x1xf32, #tpu.memory_space<smem>>
    %14 = vector.broadcast %13 : f32 to vector<1x128xf32>
    %15 = arith.addf %12, %14 : vector<1x128xf32>
    %c0_11 = arith.constant 0 : index
    %c0_12 = arith.constant 0 : index
    %16 = vector.load %arg6[%c0_11, %c0_12] : memref<1x128xf32, #tpu.memory_space<vmem>>, vector<1x128xf32>
    tpu.vector_store %arg6[%c0_11, %c0_12], %15 {strides = array<i32>} : memref<1x128xf32, #tpu.memory_space<vmem>>, vector<1x128xf32>,
    return
  }
  func.func @transform_0(%arg0: i32) -> (i32, i32) {
    %c0_i32 = arith.constant 0 : i32
    %c0_i32_0 = arith.constant 0 : i32
    return %c0_i32, %arg0 : i32, i32
  }
  func.func @transform_1(%arg0: i32) -> (i32, i32) {
    %c0_i32 = arith.constant 0 : i32
    %c0_i32_0 = arith.constant 0 : i32
    %c0_i32_1 = arith.constant 0 : i32
    return %c0_i32, %c0_i32_0 : i32, i32
  }
  func.func @transform_2(%arg0: i32) -> (i32, i32) {
    %c0_i32 = arith.constant 0 : i32
    %c0_i32_0 = arith.constant 0 : i32
    %c0_i32_1 = arith.constant 0 : i32
    return %c0_i32, %c0_i32_0 : i32, i32
  }
  func.func @transform_3(%arg0: i32) -> (i32, i32) {
    %c0_i32 = arith.constant 0 : i32
    %c0_i32_0 = arith.constant 0 : i32
    %c0_i32_1 = arith.constant 0 : i32
    return %c0_i32, %c0_i32_0 : i32, i32
  }
  func.func @transform_4(%arg0: i32) -> (i32, i32) {
    %c0_i32 = arith.constant 0 : i32
    %c0_i32_0 = arith.constant 0 : i32
    %c0_i32_1 = arith.constant 0 : i32
    return %c0_i32, %c0_i32_0 : i32, i32
  }
  func.func @transform_5(%arg0: i32) -> (i32, i32) {
    %c0_i32 = arith.constant 0 : i32
    %c0_i32_0 = arith.constant 0 : i32
    return %c0_i32, %arg0 : i32, i32
  }
}

</mosaic_0001>

<llo_original>
// kernel: tpu_custom_call.1
$region0: #{tpu_custom_call.1}
  #allocation0 [shape = 'u32[]', space=smem, size = 0x4, offset = 0x4, fixed_abs, tag = 'smem constant byte address 0x4 - core index']
  #allocation1 [shape = 'u32[72,128]{1,0:T(1,128)}', space=vmem, size = 0x9000, scoped, tag = 'internal scratch']
  #allocation2 [shape = 'f32[1,1]{1,0:T(1,128)S(6)}', space=smem, size = 0x200, scoped, tag = 'scoped memory for tpu_custom_call.1']
  %s0 = inlined_call_operand.vmem [shape: f32[10,384], index: 0, kind: input, shape index: {}]
  %s1 = inlined_call_operand.vmem [shape: f32[32,10], index: 1, kind: input, shape index: {}]
  %s2 = inlined_call_operand.vmem [shape: f32[32,1], index: 2, kind: input, shape index: {}]
  %s3 = inlined_call_operand.vmem [shape: f32[1,32], index: 3, kind: input, shape index: {}]
  %s4 = inlined_call_operand.<no memory space> [shape: f32[1,1], index: 4, kind: input, shape index: {}]
  %s5 = inlined_call_operand.hbm [shape: f32[1,384], index: 5, kind: output, shape index: {}]
  %s6 = sld [smem:[#allocation0]]
  $region91: #{tpu_custom_call.1} parent=0
    _
  %s8 = ssub.s32 1, %s6
  %s9 = scalar_select 0, %s8, %s6
  %10 = sst [smem:[#allocation2]] %s4
  $region1: #{tpu_custom_call.1} parent=0
    #allocation3 [shape = 'u8[16384]{0}', space=vmem, size = 0x4000, scoped, tag = 'input window, operand 0']
    #allocation4 [shape = 'u8[1024]{0}', space=vmem, size = 0x400, scoped, tag = 'output window, operand 0']
    #allocation5 [shape = 's32[2]{0}', space=sflag, size = 0x8, scoped, tag = 'scoped memory for tpu_custom_call.1']
    %11 = vsyncpa [#allocation5], 0
    %s12 = scalar_lea.sflag [#allocation5], 1
    %13 = vsyncpa %s12, 0
    loop: start=0, step=1, limit=5
    $region2: #{tpu_custom_call.1} parent=1 // loop_pre_header
      _
    $region3: #{tpu_custom_call.1} parent=1 // loop_header
      %s15 = sphi 0, %s19
      %p16 = scmp.ge.s32.totalorder %s15, 5
      %s25 = sphi 0, %s27
      %s28 = sphi 0, %s25
      %s29 = sphi 0, %s28
      %s45 = sphi 0, %s29
      %s49 = sphi 0, %s49
      %s51 = sphi 0, %s49
      %s52 = sphi 0, %s51
      %s66 = sphi 0, %s52
      %s70 = sphi 0, %s70
      %s72 = sphi 0, %s70
      %s73 = sphi 0, %s72
      %s87 = sphi 0, %s73
      %s91 = sphi 0, %s91
      %s93 = sphi 0, %s91
      %s94 = sphi 0, %s93
      %s108 = sphi 0, %s94
      %s112 = sphi 0, %s112
      %s114 = sphi 0, %s112
      %s115 = sphi 0, %s114
      %s129 = sphi 0, %s115
      %s135 = sphi 0, %s137
      %s138 = sphi 0, %s135
      %s139 = sphi 0, %s138
      %s155 = sphi 0, %s139
    $region4: #{tpu_custom_call.1} parent=1 // loop_header_branch
      %18 = sbr.rel (%p16) target = $region8
    $region5: #{tpu_custom_call.1} parent=1 // loop_body
      %s20 = ssub.s32 %s15, 1
      %s21 = ssub.s32 %s15, 2
      %s22 = sadd.s32 %s15, 1
      %s23 = ssub.s32 %s15, %s22
      %p24 = scmp.eq.s32.totalorder %s23, 0
      %s26 = sadd.s32 %s25, 1
      %s27 = scalar_select %p24, %s25, %s26
      %p30 = pneg %p24
      %p31 = scmp.eq.s32.totalorder %s15, 2
      %p32 = por %p30, %p31
      %p33 = scmp.ne.s32.totalorder %s25, %s28
      %p34 = scmp.eq.s32.totalorder %s15, 0
      %p35 = por %p33, %p34
      %p36 = scmp.ne.s32.totalorder %s25, %s28
      %p37 = scmp.eq.s32.totalorder %s20, 2
      %p38 = por %p36, %p37
      %p39 = scmp.ne.s32.totalorder %s28, %s29
      %p40 = scmp.eq.s32.totalorder %s20, 0
      %p41 = por %p39, %p40
      %p42 = scmp.ne.s32.totalorder %s28, %s29
      %p43 = scmp.eq.s32.totalorder %s21, 2
      %p44 = por %p42, %p43
      %p46 = scmp.ne.s32.totalorder %s29, %s45
      %p47 = scmp.eq.s32.totalorder %s21, 0
      %p48 = por %p46, %p47
      %s50 = sadd.s32 %s49, 1
      %p53 = scmp.eq.s32.totalorder %s15, 2
      %p54 = scmp.ne.s32.totalorder %s49, %s51
      %p55 = scmp.eq.s32.totalorder %s15, 0
      %p56 = por %p54, %p55
      %p57 = scmp.ne.s32.totalorder %s49, %s51
      %p58 = scmp.eq.s32.totalorder %s20, 2
      %p59 = por %p57, %p58
      %p60 = scmp.ne.s32.totalorder %s51, %s52
      %p61 = scmp.eq.s32.totalorder %s20, 0
      %p62 = por %p60, %p61
      %p63 = scmp.ne.s32.totalorder %s51, %s52
      %p64 = scmp.eq.s32.totalorder %s21, 2
      %p65 = por %p63, %p64
      %p67 = scmp.ne.s32.totalorder %s52, %s66
      %p68 = scmp.eq.s32.totalorder %s21, 0
      %p69 = por %p67, %p68
      %s71 = sadd.s32 %s70, 1
      %p74 = scmp.eq.s32.totalorder %s15, 2
      %p75 = scmp.ne.s32.totalorder %s70, %s72
      %p76 = scmp.eq.s32.totalorder %s15, 0
      %p77 = por %p75, %p76
      %p78 = scmp.ne.s32.totalorder %s70, %s72
      %p79 = scmp.eq.s32.totalorder %s20, 2
      %p80 = por %p78, %p79
      %p81 = scmp.ne.s32.totalorder %s72, %s73
      %p82 = scmp.eq.s32.totalorder %s20, 0
      %p83 = por %p81, %p82
      %p84 = scmp.ne.s32.totalorder %s72, %s73
      %p85 = scmp.eq.s32.totalorder %s21, 2
      %p86 = por %p84, %p85
      %p88 = scmp.ne.s32.totalorder %s73, %s87
      %p89 = scmp.eq.s32.totalorder %s21, 0
      %p90 = por %p88, %p89
      %s92 = sadd.s32 %s91, 1
      %p95 = scmp.eq.s32.totalorder %s15, 2
      %p96 = scmp.ne.s32.totalorder %s91, %s93
      %p97 = scmp.eq.s32.totalorder %s15, 0
      %p98 = por %p96, %p97
      %p99 = scmp.ne.s32.totalorder %s91, %s93
      %p100 = scmp.eq.s32.totalorder %s20, 2
      %p101 = por %p99, %p100
      %p102 = scmp.ne.s32.totalorder %s93, %s94
      %p103 = scmp.eq.s32.totalorder %s20, 0
      %p104 = por %p102, %p103
      %p105 = scmp.ne.s32.totalorder %s93, %s94
      %p106 = scmp.eq.s32.totalorder %s21, 2
      %p107 = por %p105, %p106
      %p109 = scmp.ne.s32.totalorder %s94, %s108
      %p110 = scmp.eq.s32.totalorder %s21, 0
      %p111 = por %p109, %p110
      %s113 = sadd.s32 %s112, 1
      %p116 = scmp.eq.s32.totalorder %s15, 2
      %p117 = scmp.ne.s32.totalorder %s112, %s114
      %p118 = scmp.eq.s32.totalorder %s15, 0
      %p119 = por %p117, %p118
      %p120 = scmp.ne.s32.totalorder %s112, %s114
      %p121 = scmp.eq.s32.totalorder %s20, 2
      %p122 = por %p120, %p121
      %p123 = scmp.ne.s32.totalorder %s114, %s115
      %p124 = scmp.eq.s32.totalorder %s20, 0
      %p125 = por %p123, %p124
      %p126 = scmp.ne.s32.totalorder %s114, %s115
      %p127 = scmp.eq.s32.totalorder %s21, 2
      %p128 = por %p126, %p127
      %p130 = scmp.ne.s32.totalorder %s115, %s129
      %p131 = scmp.eq.s32.totalorder %s21, 0
      %p132 = por %p130, %p131
      %s133 = ssub.s32 %s15, %s22
      %p134 = scmp.eq.s32.totalorder %s133, 0
      %s136 = sadd.s32 %s135, 1
      %s137 = scalar_select %p134, %s135, %s136
      %p140 = pneg %p134
      %p141 = scmp.eq.s32.totalorder %s15, 2
      %p142 = por %p140, %p141
      %p143 = scmp.ne.s32.totalorder %s135, %s138
      %p144 = scmp.eq.s32.totalorder %s15, 0
      %p145 = por %p143, %p144
      %p146 = scmp.ne.s32.totalorder %s135, %s138
      %p147 = scmp.eq.s32.totalorder %s20, 2
      %p148 = por %p146, %p147
      %p149 = scmp.ne.s32.totalorder %s138, %s139
      %p150 = scmp.eq.s32.totalorder %s20, 0
      %p151 = por %p149, %p150
      %p152 = scmp.ne.s32.totalorder %s138, %s139
      %p153 = scmp.eq.s32.totalorder %s21, 2
      %p154 = por %p152, %p153
      %p156 = scmp.ne.s32.totalorder %s139, %s155
      %p157 = scmp.eq.s32.totalorder %s21, 0
      %p158 = por %p156, %p157
      %p159 = scmp.le.s32.totalorder 1, %s15
      %p160 = scmp.lt.s32.totalorder %s15, 4
      %p161 = pnand %p159, %p160
      %p162 = pneg %p161
      // Predicated region
      $region9: #{tpu_custom_call.1} parent=5 // pred_check
        _
      $region10: #{tpu_custom_call.1} parent=5 // pred_check_branch
        %164 = sbr.rel (%p161) target = $region12
      $region11: #{tpu_custom_call.1} parent=5 // pred_region
        %s165 = ssub.s32 %s15, 1
        // Predicated region
        $region13: #{tpu_custom_call.1} parent=11 // pred_check
          %p166 = pneg %p62
        $region14: #{tpu_custom_call.1} parent=11 // pred_check_branch
          %168 = sbr.rel (%p166) target = $region16
        $region15: #{tpu_custom_call.1} parent=11 // pred_region
          _
        $region16: #{tpu_custom_call.1} parent=11 // pred_fallthru
          _
        // Predicated region
        $region17: #{tpu_custom_call.1} parent=11 // pred_check
          %p169 = pneg %p83
        $region18: #{tpu_custom_call.1} parent=11 // pred_check_branch
          %171 = sbr.rel (%p169) target = $region20
        $region19: #{tpu_custom_call.1} parent=11 // pred_region
          _
        $region20: #{tpu_custom_call.1} parent=11 // pred_fallthru
          _
        // Predicated region
        $region21: #{tpu_custom_call.1} parent=11 // pred_check
          %p172 = pneg %p104
        $region22: #{tpu_custom_call.1} parent=11 // pred_check_branch
          %174 = sbr.rel (%p172) target = $region24
        $region23: #{tpu_custom_call.1} parent=11 // pred_region
          _
        $region24: #{tpu_custom_call.1} parent=11 // pred_fallthru
          _
        // Predicated region
        $region25: #{tpu_custom_call.1} parent=11 // pred_check
          %p175 = pneg %p125
        $region26: #{tpu_custom_call.1} parent=11 // pred_check_branch
          %177 = sbr.rel (%p175) target = $region28
        $region27: #{tpu_custom_call.1} parent=11 // pred_region
          _
        $region28: #{tpu_custom_call.1} parent=11 // pred_fallthru
          _
      $region12: #{tpu_custom_call.1} parent=5 // pred_fallthru
        _
      %p178 = scmp.lt.s32.totalorder %s15, 3
      // Predicated region
      $region29: #{tpu_custom_call.1} parent=5 // pred_check
        %p179 = pneg %p178
      $region30: #{tpu_custom_call.1} parent=5 // pred_check_branch
        %181 = sbr.rel (%p179) target = $region32
      $region31: #{tpu_custom_call.1} parent=5 // pred_region
        // Predicated region
        $region33: #{tpu_custom_call.1} parent=31 // pred_check
          %p182 = pneg %p35
        $region34: #{tpu_custom_call.1} parent=31 // pred_check_branch
          %184 = sbr.rel (%p182) target = $region36
        $region35: #{tpu_custom_call.1} parent=31 // pred_region
          %s185 = sand.u32 %s25, 1
          %s186 = sand.u32 %s25, 1
          %s187 = smul.addr %s186, 16
          %s188 = scalar_lea.vmem [#allocation3], %s187
          %s189 = smul.addr %s15, 8
          %s190 = scalar_lea.vmem %s0, %s189
          // Predicated region
          $region37: #{tpu_custom_call.1} parent=35 // pred_check
            _
          $region38: #{tpu_custom_call.1} parent=35 // pred_check_branch
            %192 = sbr.rel (0) target = $region40
          $region39: #{tpu_custom_call.1} parent=35 // pred_region
            // Predicated region
            $region41: #{tpu_custom_call.1} parent=39 // pred_check
              _
            $region42: #{tpu_custom_call.1} parent=39 // pred_check_branch
              %194 = sbr.rel (0) target = $region44
            $region43: #{tpu_custom_call.1} parent=39 // pred_region
              // Predicated region
              $region56: #{tpu_custom_call.1} parent=43 // pred_check
                _
              $region57: #{tpu_custom_call.1} parent=43 // pred_check_branch
                %212 = sbr.rel (0) target = $region59
              $region58: #{tpu_custom_call.1} parent=43 // pred_region
                loop: start=0, step=1, limit=1
                $region60: #{tpu_custom_call.1} parent=58 // loop_pre_header
                  _
                $region61: #{tpu_custom_call.1} parent=58 // loop_header
                  %s214 = sphi 0, %s218
                  %p215 = scmp.ge.s32.totalorder %s214, 1
                  %s219 = sphi %s190, %s190
                  %s220 = sphi %s188, %s188
                $region62: #{tpu_custom_call.1} parent=58 // loop_header_branch
                  %217 = sbr.rel (%p215) target = $region66
                $region63: #{tpu_custom_call.1} parent=58 // loop_body
                  %v221 = vld [vmem:[%s219] sm:$0xff]
                  %222 = vst [vmem:[%s220] sm:$0xff] %v221
                  %v223 = vld [vmem:[%s219 + $0x18] sm:$0xff]
                  %224 = vst [vmem:[%s220 + $0x8] sm:$0xff] %v223
                $region64: #{tpu_custom_call.1} parent=58 // loop_footer
                  %s218 = sadd.s32 1, %s214
                $region65: #{tpu_custom_call.1} parent=58 // loop_footer_branch
                  %213 = sbr.rel target = $region61
                $region66: #{tpu_custom_call.1} parent=58 // loop_exit
                  _
              $region59: #{tpu_custom_call.1} parent=43 // pred_fallthru
                _
              // Predicated region
              $region67: #{tpu_custom_call.1} parent=43 // pred_check
                _
              $region68: #{tpu_custom_call.1} parent=43 // pred_check_branch
                %226 = sbr.rel target = $region70
              $region69: #{tpu_custom_call.1} parent=43 // pred_region
                _
              $region70: #{tpu_custom_call.1} parent=43 // pred_fallthru
                _
            $region44: #{tpu_custom_call.1} parent=39 // pred_fallthru
              _
            // Predicated region
            $region45: #{tpu_custom_call.1} parent=39 // pred_check
              _
            $region46: #{tpu_custom_call.1} parent=39 // pred_check_branch
              %196 = sbr.rel target = $region48
            $region47: #{tpu_custom_call.1} parent=39 // pred_region
              %s198 = ssub.s32 256, 1
              loop: start=0, step=1, limit=1
              $region49: #{tpu_custom_call.1} parent=47 // loop_pre_header
                _
              $region50: #{tpu_custom_call.1} parent=47 // loop_header
                %s200 = sphi 0, %s204
                %p201 = scmp.ge.s32.totalorder %s200, 1
                %s205 = sphi %s190, %s190
                %s206 = sphi %s188, %s188
              $region51: #{tpu_custom_call.1} parent=47 // loop_header_branch
                %203 = sbr.rel (%p201) target = $region55
              $region52: #{tpu_custom_call.1} parent=47 // loop_body
                %v207 = vld [vmem:[%s205] sm:%s198]
                %208 = vst [vmem:[%s206] sm:%s198] %v207
                %v209 = vld [vmem:[%s205 + $0x18] sm:%s198]
                %210 = vst [vmem:[%s206 + $0x8] sm:%s198] %v209
              $region53: #{tpu_custom_call.1} parent=47 // loop_footer
                %s204 = sadd.s32 1, %s200
              $region54: #{tpu_custom_call.1} parent=47 // loop_footer_branch
                %199 = sbr.rel target = $region50
              $region55: #{tpu_custom_call.1} parent=47 // loop_exit
                _
            $region48: #{tpu_custom_call.1} parent=39 // pred_fallthru
              _
          $region40: #{tpu_custom_call.1} parent=35 // pred_fallthru
            _
          %227 = vnop
        $region36: #{tpu_custom_call.1} parent=31 // pred_fallthru
          _
      $region32: #{tpu_custom_call.1} parent=5 // pred_fallthru
        _
      %p228 = scmp.le.s32.totalorder 1, %s15
      %p229 = scmp.lt.s32.totalorder %s15, 4
      %p230 = pnand %p228, %p229
      %p231 = pneg %p230
      // Predicated region
      $region71: #{tpu_custom_call.1} parent=5 // pred_check
        _
      $region72: #{tpu_custom_call.1} parent=5 // pred_check_branch
        %233 = sbr.rel (%p230) target = $region74
      $region73: #{tpu_custom_call.1} parent=5 // pred_region
        %s234 = ssub.s32 %s15, 1
        %s235 = sand.u32 %s28, 1
        %s236 = sand.u32 %s28, 1
        %s237 = smul.addr %s236, 16
        %s238 = scalar_lea.vmem [#allocation3], %s237
        // Predicated region
        $region75: #{tpu_custom_call.1} parent=73 // pred_check
          %p239 = pneg %p41
        $region76: #{tpu_custom_call.1} parent=73 // pred_check_branch
          %241 = sbr.rel (%p239) target = $region78
        $region77: #{tpu_custom_call.1} parent=73 // pred_region
          _
        $region78: #{tpu_custom_call.1} parent=73 // pred_fallthru
          _
        %s242 = sand.u32 %s28, 1
        %s243 = sand.u32 %s28, 1
        %s244 = smul.addr %s243, 16
        %s245 = scalar_lea.vmem [#allocation3], %s244
        %p246 = pneg %p41
        %p247 = pneg %p38
        %p248 = pneg %p62
        %p249 = pneg %p59
        %p250 = pneg %p83
        %p251 = pneg %p80
        %p252 = pneg %p104
        %p253 = pneg %p101
        %p254 = pneg %p125
        %p255 = pneg %p122
        %p256 = pneg %p151
        %p257 = pneg %p148
        %s258 = sand.u32 %s138, 1
        %s259 = scalar_lea.sflag [#allocation5], %s258
        %s260 = sand.u32 %s138, 1
        %s261 = scalar_lea.vmem [#allocation4], %s260
        %v262 = vld [vmem:[%s1] sm:$0xff]
        %v263 = vld [vmem:[%s1 + $0x8] sm:$0xff]
        %v264 = vld [vmem:[%s1 + $0x10] sm:$0xff]
        %v265 = vld [vmem:[%s1 + $0x18] sm:$0xff]
        %v266 = vld [vmem:[%s238] sm:$0xff]
        %v267 = vld [vmem:[%s238 + $0x8] sm:$0x3]
        %v268 = vld [vmem:[%s2] sm:$0xff]
        %v269 = vld [vmem:[%s2 + $0x8] sm:$0xff]
        %v270 = vld [vmem:[%s2 + $0x10] sm:$0xff]
        %v271 = vld [vmem:[%s2 + $0x18] sm:$0xff]
        %273 = vset.pattern.permute.xlu0 0
        %274 = vperm.xlu0 %273, %v268
        %v275 = vpop.permute.xlu0 %274
        %278 = vset.pattern.permute.xlu0 0
        %279 = vperm.xlu0 %278, %v269
        %v280 = vpop.permute.xlu0 %279
        %283 = vset.pattern.permute.xlu0 0
        %284 = vperm.xlu0 %283, %v270
        %v285 = vpop.permute.xlu0 %284
        %288 = vset.pattern.permute.xlu0 0
        %289 = vperm.xlu0 %288, %v271
        %v290 = vpop.permute.xlu0 %289
        %vm292 = vcmask 80896
        %v294 = vsel %vm292, %v262, 0
        %v297 = vsel %vm292, %v263, 0
        %v300 = vsel %vm292, %v264, 0
        %v303 = vsel %vm292, %v265, 0
        %vm305 = vcmask 1041408
        %v307 = vsel %vm305, %v267, 0
        %309 = vmatpush.msra.mxu0 0.0
        %310 = vmatpush.msra.mxu0 0.0
        %311 = vmatpush.msra.mxu0 0.0
        %312 = vmatpush.msra.mxu0 0.0
        %313 = vmatpush.msra.mxu0 0.0
        %314 = vmatpush.msra.mxu0 0.0
        %315 = vmatpush.msra.mxu0 0.0
        %316 = vmatpush.msra.mxu0 0.0
        %317 = vmatpush.msra.mxu0 0.0
        %318 = vmatpush.msra.mxu0 0.0
        %319 = vmatpush.msra.mxu0 0.0
        %320 = vmatpush.msra.mxu0 0.0
        %321 = vmatpush.msra.mxu0 0.0
        %322 = vmatpush.msra.mxu0 0.0
        %323 = vmatpush.msra.mxu0 %v307
        %324 = vmatpush.msra.mxu0 %v266
        %325 = vmatmul.f32.gmra.mxu0 %v294
        %v326 = vpop.f32.mrf.mxu0
        %v327 = vadd.f32 %v275, %v326
        %328 = vmatmul.f32.gmra.mxu0 %v297
        %v329 = vpop.f32.mrf.mxu0
        %v330 = vadd.f32 %v280, %v329
        %331 = vmatmul.f32.gmra.mxu0 %v300
        %v332 = vpop.f32.mrf.mxu0
        %v333 = vadd.f32 %v285, %v332
        %334 = vmatmul.f32.gmra.mxu0 %v303
        %v335 = vpop.f32.mrf.mxu0
        %v336 = vadd.f32 %v290, %v335
        %337 = vdwg.mxu0
        %v338 = vxor.u32 %v327, 2147483648
        %v339 = vxor.u32 %v330, 2147483648
        %v340 = vxor.u32 %v333, 2147483648
        %v341 = vxor.u32 %v336, 2147483648
        %v342 = vmul.f32 %v338, 1.442695
        %v343 = vpow.pop %v342
        %v344 = vmul.f32 %v339, 1.442695
        %v345 = vpow.pop %v344
        %v346 = vmul.f32 %v340, 1.442695
        %v347 = vpow.pop %v346
        %v348 = vmul.f32 %v341, 1.442695
        %v349 = vpow.pop %v348
        %v350 = vadd.f32 %v343, 1.0
        %v351 = vadd.f32 %v345, 1.0
        %v352 = vadd.f32 %v347, 1.0
        %v353 = vadd.f32 %v349, 1.0
        %v354 = vrcp.pop %v350
        %v355 = vmul.f32 %v350, %v354
        %v356 = vsub.f32 1.0, %v355
        %v357 = vmul.f32 %v354, %v356
        %v358 = vadd.f32 %v354, %v357
        %vm359 = vweird.f32 %v350
        %vm360 = vweird.f32 %v354
        %vm361 = vmor %vm359, %vm360
        %v362 = vsel %vm361, %v354, %v358
        %v363 = vand.u32 2147483647, %v350
        %vm364 = vcmp.eq.f32.partialorder %v363, 8.507059e+37
        %v365 = vand.u32 %v350, 2147483648
        %v366 = vor.u32 1.1754944e-38, %v365
        %v367 = vsel %vm364, %v366, %v362
        %v368 = vmul.f32 1.0, %v367
        %v369 = vrcp.pop %v351
        %v370 = vmul.f32 %v351, %v369
        %v371 = vsub.f32 1.0, %v370
        %v372 = vmul.f32 %v369, %v371
        %v373 = vadd.f32 %v369, %v372
        %vm374 = vweird.f32 %v351
        %vm375 = vweird.f32 %v369
        %vm376 = vmor %vm374, %vm375
        %v377 = vsel %vm376, %v369, %v373
        %v378 = vand.u32 2147483647, %v351
        %vm379 = vcmp.eq.f32.partialorder %v378, 8.507059e+37
        %v380 = vand.u32 %v351, 2147483648
        %v381 = vor.u32 1.1754944e-38, %v380
        %v382 = vsel %vm379, %v381, %v377
        %v383 = vmul.f32 1.0, %v382
        %v384 = vrcp.pop %v352
        %v385 = vmul.f32 %v352, %v384
        %v386 = vsub.f32 1.0, %v385
        %v387 = vmul.f32 %v384, %v386
        %v388 = vadd.f32 %v384, %v387
        %vm389 = vweird.f32 %v352
        %vm390 = vweird.f32 %v384
        %vm391 = vmor %vm389, %vm390
        %v392 = vsel %vm391, %v384, %v388
        %v393 = vand.u32 2147483647, %v352
        %vm394 = vcmp.eq.f32.partialorder %v393, 8.507059e+37
        %v395 = vand.u32 %v352, 2147483648
        %v396 = vor.u32 1.1754944e-38, %v395
        %v397 = vsel %vm394, %v396, %v392
        %v398 = vmul.f32 1.0, %v397
        %v399 = vrcp.pop %v353
        %v400 = vmul.f32 %v353, %v399
        %v401 = vsub.f32 1.0, %v400
        %v402 = vmul.f32 %v399, %v401
        %v403 = vadd.f32 %v399, %v402
        %vm404 = vweird.f32 %v353
        %vm405 = vweird.f32 %v399
        %vm406 = vmor %vm404, %vm405
        %v407 = vsel %vm406, %v399, %v403
        %v408 = vand.u32 2147483647, %v353
        %vm409 = vcmp.eq.f32.partialorder %v408, 8.507059e+37
        %v410 = vand.u32 %v353, 2147483648
        %v411 = vor.u32 1.1754944e-38, %v410
        %v412 = vsel %vm409, %v411, %v407
        %v413 = vmul.f32 1.0, %v412
        %v414 = vld [vmem:[%s3] sm:$0x1]
        %s415 = sld [smem:[#allocation2]]
        %v416 = vstv %s415
        %vm417 = vcmask 261120
        %v419 = vsel %vm417, %v414, 0
        %421 = vmatpush.msra.mxu0 0.0
        %422 = vmatpush.msra.mxu0 0.0
        %423 = vmatpush.msra.mxu0 0.0
        %424 = vmatpush.msra.mxu0 0.0
        %425 = vmatpush.msra.mxu0 0.0
        %426 = vmatpush.msra.mxu0 0.0
        %427 = vmatpush.msra.mxu0 0.0
        %428 = vmatpush.msra.mxu0 0.0
        %429 = vmatpush.msra.mxu0 0.0
        %430 = vmatpush.msra.mxu0 0.0
        %431 = vmatpush.msra.mxu0 0.0
        %432 = vmatpush.msra.mxu0 0.0
        %433 = vmatpush.msra.mxu0 %v413
        %434 = vmatpush.msra.mxu0 %v398
        %435 = vmatpush.msra.mxu0 %v383
        %436 = vmatpush.msra.mxu0 %v368
        %437 = vmatmul.f32.gmra.mxu0 %v419
        %v438 = vpop.f32.mrf.mxu0
        %v439 = vadd.f32 %v416, %v438
        %440 = vdwg.mxu0
        %441 = vst [vmem:[%s261] sm:$0x1] %v439
        %s442 = sand.u32 %s138, 1
        %s443 = scalar_lea.sflag [#allocation5], %s442
        %s444 = sand.u32 %s138, 1
        %s445 = scalar_lea.vmem [#allocation4], %s444
        // Predicated region
        $region79: #{tpu_custom_call.1} parent=73 // pred_check
          %p446 = pneg %p148
        $region80: #{tpu_custom_call.1} parent=73 // pred_check_branch
          %448 = sbr.rel (%p446) target = $region82
        $region81: #{tpu_custom_call.1} parent=73 // pred_region
          %450 = vsyncadd %s443, 0
          %s451 = scalar_lea.hbm %s5, %s20
          %s453 = sshll.u32 %s445, 4
          %s454 = int_to_ptr.vmem [resolvable:$true] %s453
          %s455 = sshll.u32 %s451, 4
          %s456 = int_to_ptr.hbm [resolvable:$true] %s455
          %458 = dma.vmem_to_hbm [thread:$0]  %s454, 16, %s456, %s443
        $region82: #{tpu_custom_call.1} parent=73 // pred_fallthru
          _
      $region74: #{tpu_custom_call.1} parent=5 // pred_fallthru
        _
      %p459 = scmp.le.s32.totalorder 2, %s15
      // Predicated region
      $region83: #{tpu_custom_call.1} parent=5 // pred_check
        %p460 = pneg %p459
      $region84: #{tpu_custom_call.1} parent=5 // pred_check_branch
        %462 = sbr.rel (%p460) target = $region86
      $region85: #{tpu_custom_call.1} parent=5 // pred_region
        %s463 = ssub.s32 %s15, 2
        // Predicated region
        $region87: #{tpu_custom_call.1} parent=85 // pred_check
          %p464 = pneg %p154
        $region88: #{tpu_custom_call.1} parent=85 // pred_check_branch
          %466 = sbr.rel (%p464) target = $region90
        $region89: #{tpu_custom_call.1} parent=85 // pred_region
          %s467 = sand.u32 %s139, 1
          %s468 = scalar_lea.sflag [#allocation5], %s467
          %s469 = sand.u32 %s139, 1
          %s470 = scalar_lea.vmem [#allocation4], %s469
          %472 = dma.done %s468, 16
        $region90: #{tpu_custom_call.1} parent=85 // pred_fallthru
          _
      $region86: #{tpu_custom_call.1} parent=5 // pred_fallthru
        _
    $region6: #{tpu_custom_call.1} parent=1 // loop_footer
      %s19 = sadd.s32 1, %s15
    $region7: #{tpu_custom_call.1} parent=1 // loop_footer_branch
      %14 = sbr.rel target = $region3
    $region8: #{tpu_custom_call.1} parent=1 // loop_exit
      _
    %473 = vsyncpa [#allocation5], 1
    %s474 = scalar_lea.sflag [#allocation5], 1
    %475 = vsyncpa %s474, 1

</llo_original>
